<compile_context>
chip_gen: v7x
topology: tpu7x:2x2x1
jax: 0.10.0
libtpu: 0.0.40
codegen_flags: <defaults>
</compile_context>

<pallas_src>
import math

import jax
import jax.numpy as jnp
from jax.experimental import pallas as pl
from jax.experimental.pallas import tpu as pltpu


def _avg_consensus_kernel(x_ref, o_ref):
    # x_ref: (TB, S, P) input tile; o_ref: (TB, P) output tile.
    x = x_ref[...].astype(jnp.float32)          # f32 accumulate (bf16-safe)
    inv_s = 1.0 / x_ref.shape[1]                # static 1/S
    o_ref[...] = (jnp.sum(x, axis=1) * inv_s).astype(o_ref.dtype)


def avg_consensus(x, dim=1):
    """Pallas implementation of AvgConsensus.forward: mean over `dim`, keepdim."""
    ndim = x.ndim
    dim = dim % ndim
    shape = x.shape

    pre = math.prod(shape[:dim])          # rows before the consensus axis
    s = shape[dim]                        # consensus (segment) axis
    post = math.prod(shape[dim + 1:])     # trailing feature axes (lane dim)

    # Free reshape (contiguous-axis collapse) — no transpose, no extra HBM pass.
    x3 = x.reshape(pre, s, post)

    itemsize = jnp.dtype(x.dtype).itemsize
    row_bytes = s * post * itemsize

    # Fold batch rows into each block: target ~2 MiB per input buffer so that
    # double-buffered in+out stays well under the tightest scoped-VMEM default
    # (v5e 16 MiB); TB multiple of 8 keeps the (TB, post) output block dense.
    target_block_bytes = 2 * 1024 * 1024
    tb = max(1, target_block_bytes // max(row_bytes, 1))
    if tb >= pre:
        tb = pre                          # whole array in one block
    else:
        tb = max(8, (tb // 8) * 8)        # sublane-dense output tiles
    grid = pl.cdiv(pre, tb)

    # Explicit VMEM budget: 2x double-buffered input + 2x output + headroom.
    vmem_need = 2 * tb * s * post * itemsize + 2 * tb * post * itemsize
    vmem_limit = min(max(int(1.5 * vmem_need) + (1 << 20), 8 << 20), 64 << 20)

    out2d = pl.pallas_call(
        _avg_consensus_kernel,
        out_shape=jax.ShapeDtypeStruct((pre, post), x.dtype),
        grid_spec=pltpu.PrefetchScalarGridSpec(
            num_scalar_prefetch=0,
            grid=(grid,),
            in_specs=[pl.BlockSpec((tb, s, post), lambda i: (i, 0, 0))],
            out_specs=pl.BlockSpec((tb, post), lambda i: (i, 0)),
        ),
        compiler_params=pltpu.CompilerParams(
            dimension_semantics=("parallel",),   # v7x: shard tiles over 2 TCs
            vmem_limit_bytes=vmem_limit,
        ),
    )(x3)

    # Restore keepdim (free reshape).
    return out2d.reshape(shape[:dim] + (1,) + shape[dim + 1:])


if __name__ == "__main__":
    key = jax.random.PRNGKey(0)
    k1, k2, k3, k4 = jax.random.split(key, 4)

    # 1) Canonical video layout (batch, num_segments, num_classes), lane-dense C.
    x1 = jax.random.normal(k1, (16, 8, 128), dtype=jnp.float32)
    y1 = jax.block_until_ready(avg_consensus(x1, dim=1))
    ref1 = jnp.mean(x1, axis=1, keepdims=True)
    assert y1.shape == (16, 1, 128), y1.shape
    assert jnp.allclose(y1, ref1, atol=1e-5, rtol=1e-5)

    # 2) Tiny case from the original test (C < 128 still correct).
    x2 = jax.random.normal(k2, (2, 8, 32), dtype=jnp.float32)
    y2 = jax.block_until_ready(avg_consensus(x2, dim=1))
    assert jnp.allclose(y2, jnp.mean(x2, axis=1, keepdims=True), atol=1e-5, rtol=1e-5)

    # 3) bf16 input: f32 accumulation inside the kernel.
    x3 = jax.random.normal(k3, (4, 8, 32), dtype=jnp.bfloat16)
    y3 = jax.block_until_ready(avg_consensus(x3, dim=1))
    ref3 = jnp.mean(x3.astype(jnp.float32), axis=1, keepdims=True).astype(jnp.bfloat16)
    assert y3.shape == (4, 1, 32), y3.shape
    assert jnp.allclose(y3.astype(jnp.float32), ref3.astype(jnp.float32),
                        atol=2e-2, rtol=2e-2)

    # 4) Non-default dim, handled via reshape-only glue (no transpose).
    x4 = jax.random.normal(k4, (4, 8, 32), dtype=jnp.float32)
    y4 = jax.block_until_ready(avg_consensus(x4, dim=2))
    assert y4.shape == (4, 8, 1), y4.shape
    assert jnp.allclose(y4, jnp.mean(x4, axis=2, keepdims=True), atol=1e-5, rtol=1e-5)

    print("KERNEL_OK")
</pallas_src>

<mosaic_0001>
module attributes {stable_mosaic.version = 11 : i64} {
  func.func @_avg_consensus_kernel(%arg0: i32, %arg1: memref<16x8x128xf32, #tpu.memory_space<vmem>>, %arg2: memref<16x128xf32, #tpu.memory_space<vmem>>) attributes {dimension_semantics = [#tpu.dimension_semantics<parallel>], iteration_bounds = array<i64: 1>, scalar_prefetch = 0 : i64, scratch_operands = 0 : i64, tpu.core_type = #tpu.core_type<tc>, window_params = [{transform_indices = @transform_0, window_bounds = array<i64: 16, 8, 128>}, {transform_indices = @transform_1, window_bounds = array<i64: 16, 128>}]} {
    %c0 = arith.constant 0 : index
    %c0_0 = arith.constant 0 : index
    %c0_1 = arith.constant 0 : index
    %0 = vector.load %arg1[%c0, %c0_0, %c0_1] : memref<16x8x128xf32, #tpu.memory_space<vmem>>, vector<16x8x128xf32>
    %cst = arith.constant dense<0.000000e+00> : vector<16x128xf32>
    %1 = vector.multi_reduction <add>, %0, %cst [1] : vector<16x8x128xf32> to vector<16x128xf32>
    %cst_2 = arith.constant 1.250000e-01 : f32
    %2 = vector.broadcast %cst_2 : f32 to vector<16x128xf32>
    %3 = arith.mulf %1, %2 : vector<16x128xf32>
    %c0_3 = arith.constant 0 : index
    %c0_4 = arith.constant 0 : index
    %4 = vector.load %arg2[%c0_3, %c0_4] : memref<16x128xf32, #tpu.memory_space<vmem>>, vector<16x128xf32>
    tpu.vector_store %arg2[%c0_3, %c0_4], %3 {strides = array<i32>} : memref<16x128xf32, #tpu.memory_space<vmem>>, vector<16x128xf32>,
    return
  }
  func.func @transform_0(%arg0: i32) -> (i32, i32, i32) {
    %c0_i32 = arith.constant 0 : i32
    %c0_i32_0 = arith.constant 0 : i32
    %c0_i32_1 = arith.constant 0 : i32
    return %arg0, %c0_i32, %c0_i32_0 : i32, i32, i32
  }
  func.func @transform_1(%arg0: i32) -> (i32, i32) {
    %c0_i32 = arith.constant 0 : i32
    %c0_i32_0 = arith.constant 0 : i32
    return %arg0, %c0_i32 : i32, i32
  }
}

</mosaic_0001>

<llo_original>
// kernel: tpu_custom_call.1
$region0: #{tpu_custom_call.1}
  #allocation0 [shape = 'u32[]', space=smem, size = 0x4, offset = 0x4, fixed_abs, tag = 'smem constant byte address 0x4 - core index']
  #allocation1 [shape = 'u32[144,128]{1,0:T(1,128)}', space=vmem, size = 0x12000, scoped, tag = 'internal scratch']
  %s0 = inlined_call_operand.hbm [shape: f32[16,8,128], index: 0, kind: input, shape index: {}]
  %s1 = inlined_call_operand.hbm [shape: f32[16,128], index: 1, kind: output, shape index: {}]
  %s2 = sld [smem:[#allocation0]]
  $region18: #{tpu_custom_call.1} parent=0
    _
  %s4 = ssub.s32 1, %s2
  %s5 = scalar_select 0, %s4, %s2
  $region1: #{tpu_custom_call.1} parent=0
    #allocation2 [shape = 'u8[65536]{0}', space=vmem, size = 0x10000, scoped, tag = 'input window, operand 0, single buffered']
    #allocation3 [shape = 's32[1]{0}', space=sflag, size = 0x4, scoped, tag = 'scoped memory for tpu_custom_call.1']
    #allocation4 [shape = 's32[1]{0}', space=sflag, size = 0x4, scoped, tag = 'scoped memory for tpu_custom_call.1']
    #allocation5 [shape = 'u8[8192]{0}', space=vmem, size = 0x2000, scoped, tag = 'output window, operand 0, single buffered']
    %6 = vsyncpa [#allocation3], 0
    %7 = vsyncpa [#allocation4], 0
    // Predicated region
    $region2: #{tpu_custom_call.1} parent=1 // pred_check
      _
    $region3: #{tpu_custom_call.1} parent=1 // pred_check_branch
      %9 = sbr.rel (0) target = $region5
    $region4: #{tpu_custom_call.1} parent=1 // pred_region
      %s11 = ssub.s32 2048, 2048
      %12 = vsyncadd [#allocation3], %s11
      %s13 = sshll.u32 [#allocation2], 4
      %s14 = int_to_ptr.vmem [resolvable:$true] %s13
      %19 = dma.hbm_to_vmem [thread:$0]  %s0, 2048, %s14, [#allocation3], 128, 128, 8
    $region5: #{tpu_custom_call.1} parent=1 // pred_fallthru
      _
    // Predicated region
    $region6: #{tpu_custom_call.1} parent=1 // pred_check
      _
    $region7: #{tpu_custom_call.1} parent=1 // pred_check_branch
      %21 = sbr.rel (0) target = $region9
    $region8: #{tpu_custom_call.1} parent=1 // pred_region
      %22 = dma.done [#allocation3], 2048
    $region9: #{tpu_custom_call.1} parent=1 // pred_fallthru
      _
    %v23 = vld [vmem:[#allocation2] sm:$0xff]
    %v24 = vld [vmem:[#allocation2 + $0x8] sm:$0xff]
    %v25 = vld [vmem:[#allocation2 + $0x10] sm:$0xff]
    %v26 = vld [vmem:[#allocation2 + $0x18] sm:$0xff]
    %v27 = vld [vmem:[#allocation2 + $0x20] sm:$0xff]
    %v28 = vld [vmem:[#allocation2 + $0x28] sm:$0xff]
    %v29 = vld [vmem:[#allocation2 + $0x30] sm:$0xff]
    %v30 = vld [vmem:[#allocation2 + $0x38] sm:$0xff]
    %v31 = vld [vmem:[#allocation2 + $0x40] sm:$0xff]
    %v32 = vld [vmem:[#allocation2 + $0x48] sm:$0xff]
    %v33 = vld [vmem:[#allocation2 + $0x50] sm:$0xff]
    %v34 = vld [vmem:[#allocation2 + $0x58] sm:$0xff]
    %v35 = vld [vmem:[#allocation2 + $0x60] sm:$0xff]
    %v36 = vld [vmem:[#allocation2 + $0x68] sm:$0xff]
    %v37 = vld [vmem:[#allocation2 + $0x70] sm:$0xff]
    %v38 = vld [vmem:[#allocation2 + $0x78] sm:$0xff]
    %v39 = vrot.slane %v23, 4
    %v40 = vadd.f32 %v23, %v39
    %v41 = vrot.slane %v40, 2
    %v42 = vadd.f32 %v40, %v41
    %v43 = vrot.slane %v42, 1
    %v44 = vadd.f32 %v42, %v43
    %v45 = vrot.slane %v24, 4
    %v46 = vadd.f32 %v24, %v45
    %v47 = vrot.slane %v46, 2
    %v48 = vadd.f32 %v46, %v47
    %v49 = vrot.slane %v48, 1
    %v50 = vadd.f32 %v48, %v49
    %v51 = vrot.slane %v25, 4
    %v52 = vadd.f32 %v25, %v51
    %v53 = vrot.slane %v52, 2
    %v54 = vadd.f32 %v52, %v53
    %v55 = vrot.slane %v54, 1
    %v56 = vadd.f32 %v54, %v55
    %v57 = vrot.slane %v26, 4
    %v58 = vadd.f32 %v26, %v57
    %v59 = vrot.slane %v58, 2
    %v60 = vadd.f32 %v58, %v59
    %v61 = vrot.slane %v60, 1
    %v62 = vadd.f32 %v60, %v61
    %v63 = vrot.slane %v27, 4
    %v64 = vadd.f32 %v27, %v63
    %v65 = vrot.slane %v64, 2
    %v66 = vadd.f32 %v64, %v65
    %v67 = vrot.slane %v66, 1
    %v68 = vadd.f32 %v66, %v67
    %v69 = vrot.slane %v28, 4
    %v70 = vadd.f32 %v28, %v69
    %v71 = vrot.slane %v70, 2
    %v72 = vadd.f32 %v70, %v71
    %v73 = vrot.slane %v72, 1
    %v74 = vadd.f32 %v72, %v73
    %v75 = vrot.slane %v29, 4
    %v76 = vadd.f32 %v29, %v75
    %v77 = vrot.slane %v76, 2
    %v78 = vadd.f32 %v76, %v77
    %v79 = vrot.slane %v78, 1
    %v80 = vadd.f32 %v78, %v79
    %v81 = vrot.slane %v30, 4
    %v82 = vadd.f32 %v30, %v81
    %v83 = vrot.slane %v82, 2
    %v84 = vadd.f32 %v82, %v83
    %v85 = vrot.slane %v84, 1
    %v86 = vadd.f32 %v84, %v85
    %v87 = vrot.slane %v31, 4
    %v88 = vadd.f32 %v31, %v87
    %v89 = vrot.slane %v88, 2
    %v90 = vadd.f32 %v88, %v89
    %v91 = vrot.slane %v90, 1
    %v92 = vadd.f32 %v90, %v91
    %v93 = vrot.slane %v32, 4
    %v94 = vadd.f32 %v32, %v93
    %v95 = vrot.slane %v94, 2
    %v96 = vadd.f32 %v94, %v95
    %v97 = vrot.slane %v96, 1
    %v98 = vadd.f32 %v96, %v97
    %v99 = vrot.slane %v33, 4
    %v100 = vadd.f32 %v33, %v99
    %v101 = vrot.slane %v100, 2
    %v102 = vadd.f32 %v100, %v101
    %v103 = vrot.slane %v102, 1
    %v104 = vadd.f32 %v102, %v103
    %v105 = vrot.slane %v34, 4
    %v106 = vadd.f32 %v34, %v105
    %v107 = vrot.slane %v106, 2
    %v108 = vadd.f32 %v106, %v107
    %v109 = vrot.slane %v108, 1
    %v110 = vadd.f32 %v108, %v109
    %v111 = vrot.slane %v35, 4
    %v112 = vadd.f32 %v35, %v111
    %v113 = vrot.slane %v112, 2
    %v114 = vadd.f32 %v112, %v113
    %v115 = vrot.slane %v114, 1
    %v116 = vadd.f32 %v114, %v115
    %v117 = vrot.slane %v36, 4
    %v118 = vadd.f32 %v36, %v117
    %v119 = vrot.slane %v118, 2
    %v120 = vadd.f32 %v118, %v119
    %v121 = vrot.slane %v120, 1
    %v122 = vadd.f32 %v120, %v121
    %v123 = vrot.slane %v37, 4
    %v124 = vadd.f32 %v37, %v123
    %v125 = vrot.slane %v124, 2
    %v126 = vadd.f32 %v124, %v125
    %v127 = vrot.slane %v126, 1
    %v128 = vadd.f32 %v126, %v127
    %v129 = vrot.slane %v38, 4
    %v130 = vadd.f32 %v38, %v129
    %v131 = vrot.slane %v130, 2
    %v132 = vadd.f32 %v130, %v131
    %v133 = vrot.slane %v132, 1
    %v134 = vadd.f32 %v132, %v133
    %v135 = vmul.f32 %v44, 0.125
    %v136 = vmul.f32 %v50, 0.125
    %v137 = vmul.f32 %v56, 0.125
    %v138 = vmul.f32 %v62, 0.125
    %v139 = vmul.f32 %v68, 0.125
    %v140 = vmul.f32 %v74, 0.125
    %v141 = vmul.f32 %v80, 0.125
    %v142 = vmul.f32 %v86, 0.125
    %v143 = vmul.f32 %v92, 0.125
    %v144 = vmul.f32 %v98, 0.125
    %v145 = vmul.f32 %v104, 0.125
    %v146 = vmul.f32 %v110, 0.125
    %v147 = vmul.f32 %v116, 0.125
    %v148 = vmul.f32 %v122, 0.125
    %v149 = vmul.f32 %v128, 0.125
    %v150 = vmul.f32 %v134, 0.125
    %vm167 = vcmask 1041409
    %v168 = vsel %vm167, %v136, %v135
    %vm169 = vcmask 1042434
    %v170 = vsel %vm169, %v137, %v168
    %vm171 = vcmask 1043459
    %v172 = vsel %vm171, %v138, %v170
    %vm173 = vcmask 1044484
    %v174 = vsel %vm173, %v139, %v172
    %vm175 = vcmask 1045509
    %v176 = vsel %vm175, %v140, %v174
    %vm177 = vcmask 1046534
    %v178 = vsel %vm177, %v141, %v176
    %vm179 = vcmask 1047559
    %v180 = vsel %vm179, %v142, %v178
    %v181 = vsel %vm167, %v144, %v143
    %v182 = vsel %vm169, %v145, %v181
    %v183 = vsel %vm171, %v146, %v182
    %v184 = vsel %vm173, %v147, %v183
    %v185 = vsel %vm175, %v148, %v184
    %v186 = vsel %vm177, %v149, %v185
    %v187 = vsel %vm179, %v150, %v186
    %190 = vst [vmem:[#allocation5] sm:$0xff] %v180
    %191 = vst [vmem:[#allocation5 + $0x8] sm:$0xff] %v187
    // Predicated region
    $region10: #{tpu_custom_call.1} parent=1 // pred_check
      _
    $region11: #{tpu_custom_call.1} parent=1 // pred_check_branch
      %193 = sbr.rel (0) target = $region13
    $region12: #{tpu_custom_call.1} parent=1 // pred_region
      %s195 = ssub.s32 256, 256
      %196 = vsyncadd [#allocation4], %s195
      %s197 = sshll.u32 [#allocation5], 4
      %s198 = int_to_ptr.vmem [resolvable:$true] %s197
      %203 = dma.vmem_to_hbm [thread:$0]  %s198, 256, %s1, [#allocation4], 128, 128, 8
    $region13: #{tpu_custom_call.1} parent=1 // pred_fallthru
      _
    // Predicated region
    $region14: #{tpu_custom_call.1} parent=1 // pred_check
      _
    $region15: #{tpu_custom_call.1} parent=1 // pred_check_branch
      %205 = sbr.rel (0) target = $region17
    $region16: #{tpu_custom_call.1} parent=1 // pred_region
      %206 = dma.done [#allocation4], 256
    $region17: #{tpu_custom_call.1} parent=1 // pred_fallthru
      _
    %207 = vsyncpa [#allocation3], 1
    %208 = vsyncpa [#allocation4], 1

</llo_original>
